<compile_context>
chip_gen: v7x
topology: tpu7x:2x2x1
jax: 0.10.0
libtpu: 0.0.40
codegen_flags: <defaults>
</compile_context>

<pallas_src>
import jax
import jax.numpy as jnp
from jax.experimental import pallas as pl
from jax.experimental.pallas import tpu as pltpu

EPS = 1e-5


# ----------------------------------------------------------------------------
# Small helpers
# ----------------------------------------------------------------------------
def _vmem_limit_bytes():
    """min(48 MiB, physical VMEM / 2): 32 MiB on v7x, 48 MiB on v5e/v6e."""
    cap = None
    try:
        info = pltpu.get_tpu_info()
        cap = getattr(info, "vmem_capacity_bytes", None)
    except Exception:
        cap = None
    if not cap:
        cap = 128 * 1024 * 1024
    return int(min(48 * 1024 * 1024, cap // 2))


def _contraction_tile(n, max_tile=4096, align=8):
    """Largest tile <= max_tile that exactly divides n and is a multiple of
    `align`.  Exact division is required on contracted axes (a partial block
    would sum garbage rows into the result).  Falls back to the full axis."""
    if n <= max_tile:
        return n
    start = max_tile - (max_tile % align)
    for d in range(start, 0, -align):
        if n % d == 0:
            return d
    return n


# ----------------------------------------------------------------------------
# Stage A: all conv_a / conv_b 1x1 convs (all subsets) fused into one matmul.
# ----------------------------------------------------------------------------
def _conv_ab_kernel(x_ref, w_ref, b_ref, o_ref):
    # x_ref: (1, C_in, CT)   w_ref: (NAB, C_in)   b_ref: (NAB, 1)
    acc = jnp.dot(w_ref[...], x_ref[0], preferred_element_type=jnp.float32)
    o_ref[0] = (acc + b_ref[...]).astype(o_ref.dtype)


# ----------------------------------------------------------------------------
# Stage B1: attention matrix M (K-tiled accumulation) + softmax -> A1.
# ----------------------------------------------------------------------------
def _make_attn_kernel(inv_den):
    def kernel(qab_ref, a_ref, a1_ref, m_acc):
        # qab_ref: (1, 2, kt, J)  rows of each half ordered (ic, t)
        # a_ref:   (1, J, J)      PA + I for this subset
        k = pl.program_id(2)

        @pl.when(k == 0)
        def _():
            m_acc[...] = jnp.zeros_like(m_acc)

        qa = qab_ref[0, 0]                       # (kt, J)
        qb = qab_ref[0, 1]                       # (kt, J)
        # M[j1, j2] += sum_{rows} qa[r, j1] * qb[r, j2]
        m_acc[...] += jax.lax.dot_general(
            qa, qb, (((0,), (0,)), ((), ())),
            preferred_element_type=jnp.float32)

        @pl.when(k == pl.num_programs(2) - 1)
        def _():
            m = m_acc[...] * inv_den
            m = m - jnp.max(m, axis=0, keepdims=True)   # softmax over dim -2
            e = jnp.exp(m)
            sm = e / jnp.sum(e, axis=0, keepdims=True)
            a1_ref[0, 0] = (sm + a_ref[0]).astype(a1_ref.dtype)

    return kernel


# ----------------------------------------------------------------------------
# Stage B2: graph aggregation z = x.view(C*T, J) @ A1, row-tiled over C*T.
# ----------------------------------------------------------------------------
def _apply_kernel(a1_ref, x_ref, z_ref):
    # a1_ref: (1, 1, J, J) f32   x_ref: (1, RT, J)   z_ref: (1, 1, RT, J)
    a1 = a1_ref[0, 0].astype(x_ref.dtype)
    z_ref[0, 0] = jnp.dot(x_ref[0], a1,
                          preferred_element_type=jnp.float32).astype(z_ref.dtype)


# ----------------------------------------------------------------------------
# Stage C: fused conv_d over all subsets (+BN folded) + down path + ReLU.
# ----------------------------------------------------------------------------
def _output_kernel(z_ref, x_ref, wd_ref, wdn_ref, c_ref, o_ref):
    # z_ref: (1, S*C_in, CT)  x_ref: (1, C_in, CT)
    # wd_ref: (C_out, S*C_in) wdn_ref: (C_out, C_in)  c_ref: (C_out, 1)
    y = jnp.dot(wd_ref[...], z_ref[0], preferred_element_type=jnp.float32)
    d = jnp.dot(wdn_ref[...], x_ref[0], preferred_element_type=jnp.float32)
    o_ref[0] = jnp.maximum(y + d + c_ref[...], 0.0).astype(o_ref.dtype)


# ----------------------------------------------------------------------------
# Wrapper: free HBM re-views, weight packing / BN folding, four pallas_calls.
# ----------------------------------------------------------------------------
def unit_gcn_forward(x_nchw, params, *, compute_dtype=jnp.bfloat16):
    B, C_in, T, J = x_nchw.shape
    S = params["A"].shape[0]
    C_out = params["wd"].shape[1]
    inter = params["wa"].shape[1]
    TJ = T * J
    KT = inter * T
    f32 = jnp.float32
    cdt = compute_dtype

    # Channels-first views of x (free reshapes of the NCHW buffer).
    xc = x_nchw.astype(cdt)
    x_cf = xc.reshape(B, C_in, TJ)                # (B, C, T*J)
    x_ctj = xc.reshape(B, C_in * T, J)            # (B, C*T, J)

    # Pack conv_a / conv_b weights -> one fused matmul.
    # Row order per subset: [qa_s (inter rows), qb_s (inter rows)].
    wab = jnp.concatenate(
        [jnp.concatenate([params["wa"][i], params["wb"][i]], axis=0)
         for i in range(S)], axis=0).astype(cdt)              # (2*S*inter, C_in)
    bab = jnp.concatenate(
        [jnp.concatenate([params["ba"][i], params["bb"][i]], axis=0)
         for i in range(S)], axis=0).reshape(-1, 1).astype(f32)

    # Fold inference BatchNorm into conv_d (subset-stacked) weights.
    s_bn = params["bn_gamma"] * jax.lax.rsqrt(params["bn_var"] + EPS)
    bd_sum = jnp.sum(params["bd"], axis=0)
    wd_stack = jnp.concatenate([params["wd"][i] for i in range(S)], axis=1)
    wd_fold = (wd_stack * s_bn[:, None]).astype(cdt)          # (C_out, S*C_in)
    t_y = (bd_sum - params["bn_mean"]) * s_bn + params["bn_beta"]

    # Residual / down path: conv+BN when channel counts differ, identity else.
    if "wdown" in params:
        s_bnd = params["bnd_gamma"] * jax.lax.rsqrt(params["bnd_var"] + EPS)
        wdown_fold = (params["wdown"] * s_bnd[:, None]).astype(cdt)
        t_d = (params["bdown"] - params["bnd_mean"]) * s_bnd + params["bnd_beta"]
    else:
        wdown_fold = jnp.eye(C_out, C_in, dtype=f32).astype(cdt)
        t_d = jnp.zeros((C_out,), f32)
    t_all = (t_y + t_d).reshape(C_out, 1).astype(f32)

    A = params["A"].astype(f32)                               # (S, J, J) = PA + I
    NAB = 2 * S * inter

    # Lane-dense column tile over the flattened T*J axis (stages A / C).
    # Columns are independent -> partial boundary blocks are safe (masked
    # stores); no padding of T, so M / inv_den are uncontaminated.
    col_tile = TJ if TJ <= 512 else 512
    n_ct = pl.cdiv(TJ, col_tile)

    # Contraction tile over inter*T for M (must divide exactly) and
    # independent row tile over C_in*T for the apply.
    kt = _contraction_tile(KT, max_tile=4096, align=8)
    n_kt = KT // kt
    rows = C_in * T
    rt = rows if rows <= 4096 else 4096
    n_rt = pl.cdiv(rows, rt)

    vmem_limit = _vmem_limit_bytes()

    def cparams(sem):
        return pltpu.CompilerParams(dimension_semantics=sem,
                                    vmem_limit_bytes=vmem_limit)

    # ---- stage A: qab = W_ab @ x + b  (all subsets, one matmul) -----------
    qab = pl.pallas_call(
        _conv_ab_kernel,
        out_shape=jax.ShapeDtypeStruct((B, NAB, TJ), cdt),
        grid=(B, n_ct),
        in_specs=[pl.BlockSpec((1, C_in, col_tile), lambda b, c: (b, 0, c)),
                  pl.BlockSpec((NAB, C_in), lambda b, c: (0, 0)),
                  pl.BlockSpec((NAB, 1), lambda b, c: (0, 0))],
        out_specs=pl.BlockSpec((1, NAB, col_tile), lambda b, c: (b, 0, c)),
        compiler_params=cparams(("parallel", "parallel")),
    )(x_cf, wab, bab)

    # Free HBM re-view: (B, 2*S*inter, T*J) -> (B*S, 2, inter*T, J).
    qab4 = qab.reshape(B * S, 2, KT, J)

    # ---- stage B1: M (K-tiled) + softmax -> A1 -----------------------------
    attn_kernel = _make_attn_kernel(1.0 / float(KT))
    a1 = pl.pallas_call(
        attn_kernel,
        out_shape=jax.ShapeDtypeStruct((B, S, J, J), f32),
        grid=(B, S, n_kt),
        in_specs=[pl.BlockSpec((1, 2, kt, J),
                               lambda b, s, k: (b * S + s, 0, k, 0)),
                  pl.BlockSpec((1, J, J), lambda b, s, k: (s, 0, 0))],
        out_specs=pl.BlockSpec((1, 1, J, J), lambda b, s, k: (b, s, 0, 0)),
        scratch_shapes=[pltpu.VMEM((J, J), f32)],
        compiler_params=cparams(("parallel", "parallel", "arbitrary")),
    )(qab4, A)

    # ---- stage B2: z = x.view(C*T, J) @ A1, row-tiled ----------------------
    z = pl.pallas_call(
        _apply_kernel,
        out_shape=jax.ShapeDtypeStruct((B, S, rows, J), cdt),
        grid=(B, S, n_rt),
        in_specs=[pl.BlockSpec((1, 1, J, J), lambda b, s, r: (b, s, 0, 0)),
                  pl.BlockSpec((1, rt, J), lambda b, s, r: (b, r, 0))],
        out_specs=pl.BlockSpec((1, 1, rt, J), lambda b, s, r: (b, s, r, 0)),
        compiler_params=cparams(("parallel", "parallel", "arbitrary")),
    )(a1, x_ctj)

    # Free HBM re-view: (B, S, C_in*T, J) -> (B, S*C_in, T*J).
    z_v = z.reshape(B, S * C_in, TJ)

    # ---- stage C: fused conv_d + BN + down path + ReLU ---------------------
    out = pl.pallas_call(
        _output_kernel,
        out_shape=jax.ShapeDtypeStruct((B, C_out, TJ), f32),
        grid=(B, n_ct),
        in_specs=[pl.BlockSpec((1, S * C_in, col_tile), lambda b, c: (b, 0, c)),
                  pl.BlockSpec((1, C_in, col_tile), lambda b, c: (b, 0, c)),
                  pl.BlockSpec((C_out, S * C_in), lambda b, c: (0, 0)),
                  pl.BlockSpec((C_out, C_in), lambda b, c: (0, 0)),
                  pl.BlockSpec((C_out, 1), lambda b, c: (0, 0))],
        out_specs=pl.BlockSpec((1, C_out, col_tile), lambda b, c: (b, 0, c)),
        compiler_params=cparams(("parallel", "parallel")),
    )(z_v, x_cf, wd_fold, wdown_fold, t_all)

    return out.reshape(B, C_out, T, J)            # free reshape back to NCHW


# ----------------------------------------------------------------------------
# Deterministic parameter init (shapes follow unit_gcn.__init__)
# ----------------------------------------------------------------------------
def init_params(key, C_in, C_out, J, num_subset=3, coff_embedding=4):
    inter = C_out // coff_embedding
    ks = jax.random.split(key, 12)
    f = jnp.float32
    p = {}
    # PA initialized to 1e-6; A used in forward is PA + eye(J)
    p["A"] = jnp.full((num_subset, J, J), 1e-6, f) + jnp.eye(J, dtype=f)[None]
    p["wa"] = 0.1 * jax.random.normal(ks[0], (num_subset, inter, C_in), f)
    p["ba"] = 0.05 * jax.random.normal(ks[1], (num_subset, inter), f)
    p["wb"] = 0.1 * jax.random.normal(ks[2], (num_subset, inter, C_in), f)
    p["bb"] = 0.05 * jax.random.normal(ks[3], (num_subset, inter), f)
    p["wd"] = 0.1 * jax.random.normal(ks[4], (num_subset, C_out, C_in), f)
    p["bd"] = 0.05 * jax.random.normal(ks[5], (num_subset, C_out), f)
    p["bn_gamma"] = 1.0 + 0.1 * jax.random.normal(ks[8], (C_out,), f)
    p["bn_beta"] = 0.05 * jax.random.normal(ks[9], (C_out,), f)
    p["bn_mean"] = 0.05 * jax.random.normal(ks[10], (C_out,), f)
    p["bn_var"] = 0.5 + jax.random.uniform(ks[11], (C_out,), dtype=f)
    if C_in != C_out:   # down path only when channel counts differ
        p["wdown"] = 0.1 * jax.random.normal(ks[6], (C_out, C_in), f)
        p["bdown"] = 0.05 * jax.random.normal(ks[7], (C_out,), f)
        p["bnd_gamma"] = 1.0 + 0.1 * jax.random.normal(
            jax.random.fold_in(key, 100), (C_out,), f)
        p["bnd_beta"] = 0.05 * jax.random.normal(
            jax.random.fold_in(key, 101), (C_out,), f)
        p["bnd_mean"] = 0.05 * jax.random.normal(
            jax.random.fold_in(key, 102), (C_out,), f)
        p["bnd_var"] = 0.5 + jax.random.uniform(
            jax.random.fold_in(key, 103), dtype=f, shape=(C_out,))
    return p


# ----------------------------------------------------------------------------
# Pure-JAX reference (mirrors the PyTorch forward, eval-mode BN)
# ----------------------------------------------------------------------------
def reference_forward(x, params):
    B, C, T, J = x.shape
    hi = jax.lax.Precision.HIGHEST
    A = params["A"]
    num_subset = A.shape[0]
    y = None
    for i in range(num_subset):
        qa = jnp.einsum('oc,bctj->botj', params["wa"][i], x, precision=hi) \
            + params["ba"][i][None, :, None, None]
        qb = jnp.einsum('oc,bctj->botj', params["wb"][i], x, precision=hi) \
            + params["bb"][i][None, :, None, None]
        A1 = jnp.transpose(qa, (0, 3, 1, 2)).reshape(B, J, -1)
        A2 = qb.reshape(B, -1, J)
        M = jnp.matmul(A1, A2, precision=hi) / A1.shape[-1]
        Sm = jax.nn.softmax(M, axis=-2) + A[i]
        X2 = x.reshape(B, -1, J)
        Zp = jnp.matmul(X2, Sm, precision=hi).reshape(B, C, T, J)
        z = jnp.einsum('oc,bctj->botj', params["wd"][i], Zp, precision=hi) \
            + params["bd"][i][None, :, None, None]
        y = z if y is None else y + z

    def bn(v, g, b, mu, var):
        return (v - mu[None, :, None, None]) * (
            g[None, :, None, None] * jax.lax.rsqrt(var[None, :, None, None] + EPS)
        ) + b[None, :, None, None]

    y = bn(y, params["bn_gamma"], params["bn_beta"],
           params["bn_mean"], params["bn_var"])
    if "wdown" in params:
        d = jnp.einsum('oc,bctj->botj', params["wdown"], x, precision=hi) \
            + params["bdown"][None, :, None, None]
        d = bn(d, params["bnd_gamma"], params["bnd_beta"],
               params["bnd_mean"], params["bnd_var"])
    else:
        d = x
    return jnp.maximum(y + d, 0.0)


if __name__ == "__main__":
    B, C_in, T, J = 2, 4, 16, 16
    C_out = 8
    key = jax.random.PRNGKey(0)
    kx, kp = jax.random.split(key)
    x = jax.random.normal(kx, (B, C_in, T, J), jnp.float32)
    params = init_params(kp, C_in, C_out, J)

    ref = reference_forward(x, params)

    # Exact-precision run (f32 operands): tight tolerance.
    out32 = jax.block_until_ready(
        unit_gcn_forward(x, params, compute_dtype=jnp.float32))
    assert out32.shape == (B, C_out, T, J)
    err32 = float(jnp.max(jnp.abs(out32 - ref)))
    assert jnp.allclose(out32, ref, atol=2e-3, rtol=2e-3), \
        f"f32 max abs err {err32}"

    # Production config (bf16 operands / intermediates, f32 accumulation).
    outbf = jax.block_until_ready(
        unit_gcn_forward(x, params, compute_dtype=jnp.bfloat16))
    errbf = float(jnp.max(jnp.abs(outbf - ref)))
    assert jnp.allclose(outbf, ref, atol=2e-2, rtol=2e-2), \
        f"bf16 max abs err {errbf}"

    print("KERNEL_OK")
</pallas_src>

<mosaic_0001>
module attributes {stable_mosaic.version = 11 : i64} {
  func.func @_conv_ab_kernel(%arg0: i32, %arg1: i32, %arg2: memref<1x4x256xf32, #tpu.memory_space<vmem>>, %arg3: memref<12x4xf32, #tpu.memory_space<vmem>>, %arg4: memref<12x1xf32, #tpu.memory_space<vmem>>, %arg5: memref<1x12x256xf32, #tpu.memory_space<vmem>>) attributes {dimension_semantics = [#tpu.dimension_semantics<parallel>, #tpu.dimension_semantics<parallel>], iteration_bounds = array<i64: 2, 1>, scalar_prefetch = 0 : i64, scratch_operands = 0 : i64, tpu.core_type = #tpu.core_type<tc>, window_params = [{transform_indices = @transform_0, window_bounds = array<i64: 1, 4, 256>}, {pipeline_mode = #tpu.pipeline_mode<synchronous>, transform_indices = @transform_1, window_bounds = array<i64: 12, 4>}, {pipeline_mode = #tpu.pipeline_mode<synchronous>, transform_indices = @transform_2, window_bounds = array<i64: 12, 1>}, {transform_indices = @transform_3, window_bounds = array<i64: 1, 12, 256>}]} {
    %c0 = arith.constant 0 : index
    %c0_0 = arith.constant 0 : index
    %0 = vector.load %arg3[%c0, %c0_0] : memref<12x4xf32, #tpu.memory_space<vmem>>, vector<12x4xf32>
    %c0_1 = arith.constant 0 : index
    %c0_2 = arith.constant 0 : index
    %c0_3 = arith.constant 0 : index
    %1 = vector.load %arg2[%c0_1, %c0_2, %c0_3] : memref<1x4x256xf32, #tpu.memory_space<vmem>>, vector<1x4x256xf32>
    %2 = vector.shape_cast %1 : vector<1x4x256xf32> to vector<4x256xf32>
    %cst = arith.constant dense<0.000000e+00> : vector<12x256xf32>
    %3 = tpu.matmul %0, %2, %cst {dimension_numbers = #tpu.dot_dimension_numbers<[1], [0], [0], [1], [0, 0, 1, 1], [], []>} : vector<12x4xf32>, vector<4x256xf32>, vector<12x256xf32> -> vector<12x256xf32>
    %c0_4 = arith.constant 0 : index
    %c0_5 = arith.constant 0 : index
    %4 = vector.load %arg4[%c0_4, %c0_5] : memref<12x1xf32, #tpu.memory_space<vmem>>, vector<12x1xf32>
    %5 = vector.broadcast %4 : vector<12x1xf32> to vector<12x256xf32>
    %6 = arith.addf %3, %5 : vector<12x256xf32>
    %c0_6 = arith.constant 0 : index
    %c0_7 = arith.constant 0 : index
    %c0_8 = arith.constant 0 : index
    %7 = vector.load %arg5[%c0_6, %c0_7, %c0_8] : memref<1x12x256xf32, #tpu.memory_space<vmem>>, vector<1x12x256xf32>
    %8 = vector.shape_cast %7 : vector<1x12x256xf32> to vector<12x256xf32>
    %9 = vector.shape_cast %6 : vector<12x256xf32> to vector<1x12x256xf32>
    tpu.vector_store %arg5[%c0_6, %c0_7, %c0_8], %9 {strides = array<i32>} : memref<1x12x256xf32, #tpu.memory_space<vmem>>, vector<1x12x256xf32>,
    return
  }
  func.func @transform_0(%arg0: i32, %arg1: i32) -> (i32, i32, i32) {
    %c0_i32 = arith.constant 0 : i32
    %c0_i32_0 = arith.constant 0 : i32
    return %arg0, %c0_i32, %arg1 : i32, i32, i32
  }
  func.func @transform_1(%arg0: i32, %arg1: i32) -> (i32, i32) {
    %c0_i32 = arith.constant 0 : i32
    %c0_i32_0 = arith.constant 0 : i32
    %c0_i32_1 = arith.constant 0 : i32
    return %c0_i32, %c0_i32_0 : i32, i32
  }
  func.func @transform_2(%arg0: i32, %arg1: i32) -> (i32, i32) {
    %c0_i32 = arith.constant 0 : i32
    %c0_i32_0 = arith.constant 0 : i32
    %c0_i32_1 = arith.constant 0 : i32
    return %c0_i32, %c0_i32_0 : i32, i32
  }
  func.func @transform_3(%arg0: i32, %arg1: i32) -> (i32, i32, i32) {
    %c0_i32 = arith.constant 0 : i32
    %c0_i32_0 = arith.constant 0 : i32
    return %arg0, %c0_i32, %arg1 : i32, i32, i32
  }
}

</mosaic_0001>

<llo_original>
// kernel: tpu_custom_call.1
$region0: #{tpu_custom_call.1}
  #allocation0 [shape = 'u32[]', space=smem, size = 0x4, offset = 0x4, fixed_abs, tag = 'smem constant byte address 0x4 - core index']
  #allocation1 [shape = 'u32[144,128]{1,0:T(1,128)}', space=vmem, size = 0x12000, scoped, tag = 'internal scratch']
  %s0 = inlined_call_operand.vmem [shape: f32[2,4,256], index: 0, kind: input, shape index: {}]
  %s1 = inlined_call_operand.vmem [shape: f32[12,4], index: 1, kind: input, shape index: {}]
  %s2 = inlined_call_operand.vmem [shape: f32[12,1], index: 2, kind: input, shape index: {}]
  %s3 = inlined_call_operand.vmem [shape: f32[2,12,256], index: 3, kind: output, shape index: {}]
  %s4 = sld [smem:[#allocation0]]
  $region45: #{tpu_custom_call.1} parent=0
    _
  %s6 = ssub.s32 1, %s4
  %s7 = scalar_select 0, %s6, %s4
  loop: start=0, step=1, limit=4
  $region2: #{tpu_custom_call.1} parent=0 // loop_pre_header
    _
  $region3: #{tpu_custom_call.1} parent=0 // loop_header
    %s9 = sphi 0, %s13
    %p10 = scmp.ge.s32.totalorder %s9, 4
    %s16 = sphi 0, %s28
    %s17 = sphi 0, %s24
    %s18 = sphi 0, %s16
    %s19 = sphi 0, %s17
    %s20 = sphi 0, %s18
    %s21 = sphi 0, %s19
    %s33 = sphi 0, %s35
    %s36 = sphi 0, %s33
    %s37 = sphi 0, %s36
    %s53 = sphi 0, %s37
    %s57 = sphi 0, %s57
    %s59 = sphi 0, %s57
    %s60 = sphi 0, %s59
    %s74 = sphi 0, %s60
    %s78 = sphi 0, %s78
    %s80 = sphi 0, %s78
    %s81 = sphi 0, %s80
    %s95 = sphi 0, %s81
    %s103 = sphi 0, %s105
    %s106 = sphi 0, %s103
    %s107 = sphi 0, %s106
    %s123 = sphi 0, %s107
  $region4: #{tpu_custom_call.1} parent=0 // loop_header_branch
    %12 = sbr.rel (%p10) target = $region8
  $region5: #{tpu_custom_call.1} parent=0 // loop_body
    %s14 = ssub.s32 %s9, 1
    %s15 = ssub.s32 %s9, 2
    %s22 = sadd.s32 1, %s17
    %p23 = scmp.ge.s32.totalorder %s22, 1
    %s24 = scalar_select %p23, 0, %s22
    %s25 = sadd.s32 1, %s16
    %s26 = scalar_select %p23, %s25, %s16
    %p27 = scmp.ge.s32.totalorder %s26, 2
    %s28 = scalar_select %p27, 0, %s26
    %s29 = ssub.s32 %s16, %s28
    %s30 = ssub.s32 %s17, %s24
    %s31 = sor.u32 %s29, %s30
    %p32 = scmp.eq.s32.totalorder %s31, 0
    %s34 = sadd.s32 %s33, 1
    %s35 = scalar_select %p32, %s33, %s34
    %p38 = pneg %p32
    %p39 = scmp.eq.s32.totalorder %s9, 1
    %p40 = por %p38, %p39
    %p41 = scmp.ne.s32.totalorder %s33, %s36
    %p42 = scmp.eq.s32.totalorder %s9, 0
    %p43 = por %p41, %p42
    %p44 = scmp.ne.s32.totalorder %s33, %s36
    %p45 = scmp.eq.s32.totalorder %s14, 1
    %p46 = por %p44, %p45
    %p47 = scmp.ne.s32.totalorder %s36, %s37
    %p48 = scmp.eq.s32.totalorder %s14, 0
    %p49 = por %p47, %p48
    %p50 = scmp.ne.s32.totalorder %s36, %s37
    %p51 = scmp.eq.s32.totalorder %s15, 1
    %p52 = por %p50, %p51
    %p54 = scmp.ne.s32.totalorder %s37, %s53
    %p55 = scmp.eq.s32.totalorder %s15, 0
    %p56 = por %p54, %p55
    %s58 = sadd.s32 %s57, 1
    %p61 = scmp.eq.s32.totalorder %s9, 1
    %p62 = scmp.ne.s32.totalorder %s57, %s59
    %p63 = scmp.eq.s32.totalorder %s9, 0
    %p64 = por %p62, %p63
    %p65 = scmp.ne.s32.totalorder %s57, %s59
    %p66 = scmp.eq.s32.totalorder %s14, 1
    %p67 = por %p65, %p66
    %p68 = scmp.ne.s32.totalorder %s59, %s60
    %p69 = scmp.eq.s32.totalorder %s14, 0
    %p70 = por %p68, %p69
    %p71 = scmp.ne.s32.totalorder %s59, %s60
    %p72 = scmp.eq.s32.totalorder %s15, 1
    %p73 = por %p71, %p72
    %p75 = scmp.ne.s32.totalorder %s60, %s74
    %p76 = scmp.eq.s32.totalorder %s15, 0
    %p77 = por %p75, %p76
    %s79 = sadd.s32 %s78, 1
    %p82 = scmp.eq.s32.totalorder %s9, 1
    %p83 = scmp.ne.s32.totalorder %s78, %s80
    %p84 = scmp.eq.s32.totalorder %s9, 0
    %p85 = por %p83, %p84
    %p86 = scmp.ne.s32.totalorder %s78, %s80
    %p87 = scmp.eq.s32.totalorder %s14, 1
    %p88 = por %p86, %p87
    %p89 = scmp.ne.s32.totalorder %s80, %s81
    %p90 = scmp.eq.s32.totalorder %s14, 0
    %p91 = por %p89, %p90
    %p92 = scmp.ne.s32.totalorder %s80, %s81
    %p93 = scmp.eq.s32.totalorder %s15, 1
    %p94 = por %p92, %p93
    %p96 = scmp.ne.s32.totalorder %s81, %s95
    %p97 = scmp.eq.s32.totalorder %s15, 0
    %p98 = por %p96, %p97
    %s99 = ssub.s32 %s16, %s28
    %s100 = ssub.s32 %s17, %s24
    %s101 = sor.u32 %s99, %s100
    %p102 = scmp.eq.s32.totalorder %s101, 0
    %s104 = sadd.s32 %s103, 1
    %s105 = scalar_select %p102, %s103, %s104
    %p108 = pneg %p102
    %p109 = scmp.eq.s32.totalorder %s9, 1
    %p110 = por %p108, %p109
    %p111 = scmp.ne.s32.totalorder %s103, %s106
    %p112 = scmp.eq.s32.totalorder %s9, 0
    %p113 = por %p111, %p112
    %p114 = scmp.ne.s32.totalorder %s103, %s106
    %p115 = scmp.eq.s32.totalorder %s14, 1
    %p116 = por %p114, %p115
    %p117 = scmp.ne.s32.totalorder %s106, %s107
    %p118 = scmp.eq.s32.totalorder %s14, 0
    %p119 = por %p117, %p118
    %p120 = scmp.ne.s32.totalorder %s106, %s107
    %p121 = scmp.eq.s32.totalorder %s15, 1
    %p122 = por %p120, %p121
    %p124 = scmp.ne.s32.totalorder %s107, %s123
    %p125 = scmp.eq.s32.totalorder %s15, 0
    %p126 = por %p124, %p125
    %p127 = scmp.le.s32.totalorder 1, %s9
    %p128 = scmp.lt.s32.totalorder %s9, 3
    %p129 = pnand %p127, %p128
    %p130 = pneg %p129
    // Predicated region
    $region9: #{tpu_custom_call.1} parent=5 // pred_check
      _
    $region10: #{tpu_custom_call.1} parent=5 // pred_check_branch
      %132 = sbr.rel (%p129) target = $region12
    $region11: #{tpu_custom_call.1} parent=5 // pred_region
      %s133 = ssub.s32 %s9, 1
      // Predicated region
      $region13: #{tpu_custom_call.1} parent=11 // pred_check
        %p134 = pneg %p70
      $region14: #{tpu_custom_call.1} parent=11 // pred_check_branch
        %136 = sbr.rel (%p134) target = $region16
      $region15: #{tpu_custom_call.1} parent=11 // pred_region
        _
      $region16: #{tpu_custom_call.1} parent=11 // pred_fallthru
        _
      // Predicated region
      $region17: #{tpu_custom_call.1} parent=11 // pred_check
        %p137 = pneg %p91
      $region18: #{tpu_custom_call.1} parent=11 // pred_check_branch
        %139 = sbr.rel (%p137) target = $region20
      $region19: #{tpu_custom_call.1} parent=11 // pred_region
        _
      $region20: #{tpu_custom_call.1} parent=11 // pred_fallthru
        _
    $region12: #{tpu_custom_call.1} parent=5 // pred_fallthru
      _
    %p140 = scmp.lt.s32.totalorder %s9, 2
    // Predicated region
    $region21: #{tpu_custom_call.1} parent=5 // pred_check
      %p141 = pneg %p140
    $region22: #{tpu_custom_call.1} parent=5 // pred_check_branch
      %143 = sbr.rel (%p141) target = $region24
    $region23: #{tpu_custom_call.1} parent=5 // pred_region
      // Predicated region
      $region25: #{tpu_custom_call.1} parent=23 // pred_check
        %p144 = pneg %p43
      $region26: #{tpu_custom_call.1} parent=23 // pred_check_branch
        %146 = sbr.rel (%p144) target = $region28
      $region27: #{tpu_custom_call.1} parent=23 // pred_region
        %s147 = smul.u32 2, %s17
        %p148 = scmp.lt.s32.totalorder %s16, 1
        %s149 = scalar_select %p148, %s16, 1
        %p150 = scmp.lt.s32.totalorder %s147, 1
        %s151 = scalar_select %p150, %s147, 1
        %s152 = smul.addr %s149, 2
        %s153 = sadd.s32 %s151, %s152
        %s154 = smul.addr %s153, 4
        %s155 = scalar_lea.vmem %s0, %s154
        %s156 = smul.u32 2, %s17
      $region28: #{tpu_custom_call.1} parent=23 // pred_fallthru
        _
    $region24: #{tpu_custom_call.1} parent=5 // pred_fallthru
      _
    %p157 = scmp.le.s32.totalorder 1, %s9
    %p158 = scmp.lt.s32.totalorder %s9, 3
    %p159 = pnand %p157, %p158
    %p160 = pneg %p159
    // Predicated region
    $region29: #{tpu_custom_call.1} parent=5 // pred_check
      _
    $region30: #{tpu_custom_call.1} parent=5 // pred_check_branch
      %162 = sbr.rel (%p159) target = $region32
    $region31: #{tpu_custom_call.1} parent=5 // pred_region
      %s163 = ssub.s32 %s9, 1
      %s164 = smul.u32 2, %s19
      %p165 = scmp.lt.s32.totalorder %s18, 1
      %s166 = scalar_select %p165, %s18, 1
      %p167 = scmp.lt.s32.totalorder %s164, 1
      %s168 = scalar_select %p167, %s164, 1
      %s169 = smul.addr %s166, 2
      %s170 = sadd.s32 %s168, %s169
      %s171 = smul.addr %s170, 4
      %s172 = scalar_lea.vmem %s0, %s171
      %p173 = pneg %p49
      %p174 = pneg %p46
      %p175 = pneg %p70
      %p176 = pneg %p67
      %p177 = pneg %p91
      %p178 = pneg %p88
      %p179 = pneg %p119
      %p180 = pneg %p116
      %s181 = smul.u32 2, %s19
      %p182 = scmp.lt.s32.totalorder %s18, 1
      %s183 = scalar_select %p182, %s18, 1
      %p184 = scmp.lt.s32.totalorder %s181, 1
      %s185 = scalar_select %p184, %s181, 1
      %s186 = smul.addr %s183, 4
      %s187 = sadd.s32 %s185, %s186
      %s188 = smul.addr %s187, 8
      %s189 = scalar_lea.vmem %s3, %s188
      %s190 = smul.u32 2, %s19
      %p191 = scmp.lt.s32.totalorder %s18, 1
      %s192 = scalar_select %p191, %s18, 1
      %p193 = scmp.lt.s32.totalorder %s190, 1
      %s194 = scalar_select %p193, %s190, 1
      %s195 = smul.addr %s192, 2
      %s196 = sadd.s32 %s194, %s195
      %s197 = smul.addr %s196, 4
      %s198 = scalar_lea.vmem %s0, %s197
      %s199 = smul.u32 2, %s19
      %s200 = smul.u32 2, %s19
      %p201 = scmp.lt.s32.totalorder %s18, 1
      %s202 = scalar_select %p201, %s18, 1
      %p203 = scmp.lt.s32.totalorder %s200, 1
      %s204 = scalar_select %p203, %s200, 1
      %s205 = smul.addr %s202, 4
      %s206 = sadd.s32 %s204, %s205
      %s207 = smul.addr %s206, 8
      %s208 = scalar_lea.vmem %s3, %s207
      %s209 = smul.u32 2, %s19
      %v210 = vld [vmem:[%s1] sm:$0xff]
      %v211 = vld [vmem:[%s1 + $0x8] sm:$0xf]
      %v212 = vld [vmem:[%s198] sm:$0xff]
      %v213 = vld [vmem:[%s2] sm:$0xff]
      %v214 = vld [vmem:[%s2 + $0x8] sm:$0xf]
      %216 = vset.pattern.permute.xlu0 0
      %217 = vperm.xlu0 %216, %v213
      %v218 = vpop.permute.xlu0 %217
      %221 = vset.pattern.permute.xlu0 0
      %222 = vperm.xlu0 %221, %v214
      %v223 = vpop.permute.xlu0 %222
      %v226 = vcombine.high %v212, %v212
      %vm227 = vcmask 31744
      %v229 = vsel %vm227, %v210, 0
      %v232 = vsel %vm227, %v211, 0
      %vm234 = vcmask 1043456
      %v235 = vsel %vm234, %v212, 0
      %v237 = vsel %vm234, %v226, 0
      %239 = vmatprep.subr.mxu0 %v237
      %240 = vmatpush1.msra.mxu0 %v235
      %241 = vmatprep.subr.mxu0 0.0
      %242 = vmatpush1.msra.mxu0 0.0
      %243 = vmatprep.subr.mxu0 0.0
      %244 = vmatpush1.msra.mxu0 0.0
      %245 = vmatprep.subr.mxu0 0.0
      %246 = vmatpush1.msra.mxu0 0.0
      %247 = vmatprep.subr.mxu0 0.0
      %248 = vmatpush1.msra.mxu0 0.0
      %249 = vmatprep.subr.mxu0 0.0
      %250 = vmatpush1.msra.mxu0 0.0
      %251 = vmatprep.subr.mxu0 0.0
      %252 = vmatpush1.msra.mxu0 0.0
      %253 = vmatprep.subr.mxu0 0.0
      %254 = vmatpush1.msra.mxu0 0.0
      %255 = vmatprep.subr.mxu0 0.0
      %256 = vmatpush1.msra.mxu0 0.0
      %257 = vmatprep.subr.mxu0 0.0
      %258 = vmatpush1.msra.mxu0 0.0
      %259 = vmatprep.subr.mxu0 0.0
      %260 = vmatpush1.msra.mxu0 0.0
      %261 = vmatprep.subr.mxu0 0.0
      %262 = vmatpush1.msra.mxu0 0.0
      %263 = vmatprep.subr.mxu0 0.0
      %264 = vmatpush1.msra.mxu0 0.0
      %265 = vmatprep.subr.mxu0 0.0
      %266 = vmatpush1.msra.mxu0 0.0
      %267 = vmatprep.subr.mxu0 0.0
      %268 = vmatpush1.msra.mxu0 0.0
      %269 = vmatprep.subr.mxu0 0.0
      %270 = vmatpush1.msra.mxu0 0.0
      %271 = vmatprep.subr.mxu0 0.0
      %272 = vmatpush1.msra.mxu0 0.0
      %273 = vmatprep.subr.mxu0 0.0
      %274 = vmatpush1.msra.mxu0 0.0
      %275 = vmatprep.subr.mxu0 0.0
      %276 = vmatpush1.msra.mxu0 0.0
      %277 = vmatprep.subr.mxu0 0.0
      %278 = vmatpush1.msra.mxu0 0.0
      %279 = vmatprep.subr.mxu0 0.0
      %280 = vmatpush1.msra.mxu0 0.0
      %281 = vmatprep.subr.mxu0 0.0
      %282 = vmatpush1.msra.mxu0 0.0
      %283 = vmatprep.subr.mxu0 0.0
      %284 = vmatpush1.msra.mxu0 0.0
      %285 = vmatprep.subr.mxu0 0.0
      %286 = vmatpush1.msra.mxu0 0.0
      %287 = vmatprep.subr.mxu0 0.0
      %288 = vmatpush1.msra.mxu0 0.0
      %289 = vmatprep.subr.mxu0 0.0
      %290 = vmatpush1.msra.mxu0 0.0
      %291 = vmatprep.subr.mxu0 0.0
      %292 = vmatpush1.msra.mxu0 0.0
      %293 = vmatprep.subr.mxu0 0.0
      %294 = vmatpush1.msra.mxu0 0.0
      %295 = vmatprep.subr.mxu0 0.0
      %296 = vmatpush1.msra.mxu0 0.0
      %297 = vmatprep.subr.mxu0 0.0
      %298 = vmatpush1.msra.mxu0 0.0
      %299 = vmatprep.subr.mxu0 0.0
      %300 = vmatpush1.msra.mxu0 0.0
      %301 = vmatprep.subr.mxu0 0.0
      %302 = vmatpush1.msra.mxu0 0.0
      %303 = vmatprep.mubr.f32.mxu0 0.0
      %304 = vmatmul.mubr.f32.gmra.mrb[0].mxu0 %v229
      %v305 = vpop.f32.mrb[0].mxu0
      %v306 = vadd.f32 %v218, %v305
      %v307 = vpop.f32.mrb[0].mxu0
      %v308 = vadd.f32 %v218, %v307
      %309 = vmatprep.mubr.f32.mxu0 0.0
      %310 = vmatmul.mubr.f32.gmra.mrb[0].mxu0 %v232
      %v311 = vpop.f32.mrb[0].mxu0
      %v312 = vadd.f32 %v223, %v311
      %v313 = vpop.f32.mrb[0].mxu0
      %v314 = vadd.f32 %v223, %v313
      %315 = vdwg.mxu0
      %316 = vst [vmem:[%s208] sm:$0xff] %v306
      %317 = vst [vmem:[%s208 + $0x8] sm:$0xff] %v308
      %318 = vst [vmem:[%s208 + $0x10] sm:$0xf] %v312
      %319 = vst [vmem:[%s208 + $0x18] sm:$0xf] %v314
      %s320 = smul.u32 2, %s19
      %p321 = scmp.lt.s32.totalorder %s18, 1
      %s322 = scalar_select %p321, %s18, 1
      %p323 = scmp.lt.s32.totalorder %s320, 1
      %s324 = scalar_select %p323, %s320, 1
      %s325 = smul.addr %s322, 4
      %s326 = sadd.s32 %s324, %s325
      %s327 = smul.addr %s326, 8
      %s328 = scalar_lea.vmem %s3, %s327
      // Predicated region
      $region33: #{tpu_custom_call.1} parent=31 // pred_check
        %p329 = pneg %p116
      $region34: #{tpu_custom_call.1} parent=31 // pred_check_branch
        %331 = sbr.rel (%p329) target = $region36
      $region35: #{tpu_custom_call.1} parent=31 // pred_region
        %s332 = smul.u32 2, %s19
      $region36: #{tpu_custom_call.1} parent=31 // pred_fallthru
        _
    $region32: #{tpu_custom_call.1} parent=5 // pred_fallthru
      _
    %p333 = scmp.le.s32.totalorder 2, %s9
    // Predicated region
    $region37: #{tpu_custom_call.1} parent=5 // pred_check
      %p334 = pneg %p333
    $region38: #{tpu_custom_call.1} parent=5 // pred_check_branch
      %336 = sbr.rel (%p334) target = $region40
    $region39: #{tpu_custom_call.1} parent=5 // pred_region
      %s337 = ssub.s32 %s9, 2
      // Predicated region
      $region41: #{tpu_custom_call.1} parent=39 // pred_check
        %p338 = pneg %p122
      $region42: #{tpu_custom_call.1} parent=39 // pred_check_branch
        %340 = sbr.rel (%p338) target = $region44
      $region43: #{tpu_custom_call.1} parent=39 // pred_region
        %s341 = smul.u32 2, %s21
        %p342 = scmp.lt.s32.totalorder %s20, 1
        %s343 = scalar_select %p342, %s20, 1
        %p344 = scmp.lt.s32.totalorder %s341, 1
        %s345 = scalar_select %p344, %s341, 1
        %s346 = smul.addr %s343, 4
        %s347 = sadd.s32 %s345, %s346
        %s348 = smul.addr %s347, 8
        %s349 = scalar_lea.vmem %s3, %s348
      $region44: #{tpu_custom_call.1} parent=39 // pred_fallthru
        _
    $region40: #{tpu_custom_call.1} parent=5 // pred_fallthru
      _
  $region6: #{tpu_custom_call.1} parent=0 // loop_footer
    %s13 = sadd.s32 1, %s9
  $region7: #{tpu_custom_call.1} parent=0 // loop_footer_branch
    %8 = sbr.rel target = $region3
  $region8: #{tpu_custom_call.1} parent=0 // loop_exit
    _

</llo_original>
